<compile_context>
chip_gen: v7x
topology: tpu7x:2x2x1
jax: 0.10.0
libtpu: 0.0.40
codegen_flags: <defaults>
</compile_context>

<pallas_src>
import math
from functools import partial

import jax
import jax.numpy as jnp
from jax import lax
from jax.experimental import pallas as pl
from jax.experimental.pallas import tpu as pltpu


def _round_up(x, m):
    return ((x + m - 1) // m) * m


def _vmem_limit_bytes(tc, b_p, in_p, hid_p, nout):
    need = (
        2 * tc * b_p * nout * 4        # streamed XW tile (double-buffered, f32)
        + 2 * tc * b_p * nout * 4      # streamed y tile  (double-buffered, f32)
        + 2 * tc * b_p * in_p * 2      # streamed x tile  (prologue, bf16)
        + in_p * nout * 2              # Wx resident (bf16, single-buffered)
        + hid_p * nout * 2             # Wh resident (bf16, single-buffered)
        + 2 * b_p * hid_p * 4          # h0 + hidden scratch (f32)
        + nout * 4                     # bias
    )
    # Floor at 32 MiB (safe everywhere), cap at 64 MiB (v7x physical VMEM/TC).
    return int(min(max(2 * need, 32 * 1024 * 1024), 64 * 1024 * 1024))


# ----------------------------------------------------------------------------
# Kernel 1: time-parallel input projection   XW = x @ Wx + b
# ----------------------------------------------------------------------------
def _xproj_kernel(x_ref, wx_ref, b_ref, xw_ref):
    xw_ref[...] = (
        jnp.dot(x_ref[...], wx_ref[...], preferred_element_type=jnp.float32)
        + b_ref[...]
    )


# ----------------------------------------------------------------------------
# Kernel 2: sequential recurrence.  One grid step == TC timesteps.
#   y_t = XW[t] + h_{t-1} @ Wh ;  hidden carried in VMEM scratch (f32).
# ----------------------------------------------------------------------------
def _rnn_seq_kernel(xw_ref, h0_ref, wh_ref, y_ref, h_scr, *, hid_p, tc):
    @pl.when(pl.program_id(0) == 0)
    def _():
        h_scr[...] = h0_ref[...]

    def step(t, h):
        # bf16 operands on the MXU, f32 accumulation; h carry stays f32.
        y = xw_ref[t] + jnp.dot(h.astype(jnp.bfloat16), wh_ref[...],
                                preferred_element_type=jnp.float32)
        y_ref[t] = y
        # New hidden = first HID_P columns (padded weight rows/cols and bias
        # entries are exactly zero, so padded lanes stay zero).
        return y[:, :hid_p]

    h_scr[...] = lax.fori_loop(0, tc, step, h_scr[...], unroll=True)


# ----------------------------------------------------------------------------
# One-time parameter preparation (PyTorch layout -> packed, padded, transposed)
# ----------------------------------------------------------------------------
def prepare_params(params, input_size, hidden_size, output_size):
    in_p = _round_up(input_size, 128)
    hid_p = _round_up(hidden_size, 128)
    out_p = _round_up(output_size, 128)
    nout = hid_p + out_p

    w_i2h = params["w_i2h"].astype(jnp.float32)   # (hidden, input + hidden)
    w_i2o = params["w_i2o"].astype(jnp.float32)   # (output, input + hidden)

    wx = jnp.zeros((in_p, nout), jnp.float32)
    wx = wx.at[:input_size, :hidden_size].set(w_i2h[:, :input_size].T)
    wx = wx.at[:input_size, hid_p:hid_p + output_size].set(w_i2o[:, :input_size].T)

    wh = jnp.zeros((hid_p, nout), jnp.float32)
    wh = wh.at[:hidden_size, :hidden_size].set(w_i2h[:, input_size:].T)
    wh = wh.at[:hidden_size, hid_p:hid_p + output_size].set(w_i2o[:, input_size:].T)

    b = jnp.zeros((1, nout), jnp.float32)
    b = b.at[0, :hidden_size].set(params["b_i2h"])
    b = b.at[0, hid_p:hid_p + output_size].set(params["b_i2o"])

    return {
        "wx": wx.astype(jnp.bfloat16),   # MXU fast path; padded entries stay 0
        "wh": wh.astype(jnp.bfloat16),
        "b": b,                          # bias kept f32, folded into XW prologue
        "input_size": input_size, "hidden_size": hidden_size,
        "output_size": output_size,
        "in_p": in_p, "hid_p": hid_p, "out_p": out_p, "nout": nout,
    }


# ----------------------------------------------------------------------------
# Sequence forward: x_seq (T, B, input_size), h0 (B, hidden_size)
#   returns (outputs (T, B, output_size), hiddens (T, B, hidden_size))
# ----------------------------------------------------------------------------
def rnn_forward_seq(x_seq, h0, prep, *, tc=8):
    T, B, input_size = x_seq.shape
    hidden_size = prep["hidden_size"]
    output_size = prep["output_size"]
    in_p, hid_p, nout = prep["in_p"], prep["hid_p"], prep["nout"]

    tc = max(1, min(tc, T))                 # timesteps per grid step
    t_pad = _round_up(T, tc)
    b_p = _round_up(max(B, 8), 8)
    vmem_limit = _vmem_limit_bytes(tc, b_p, in_p, hid_p, nout)

    # Activation padding (once per call); weights were packed at prep time.
    x_pad = jnp.zeros((t_pad, b_p, in_p), jnp.bfloat16)
    x_pad = x_pad.at[:T, :B, :input_size].set(x_seq.astype(jnp.bfloat16))
    h0_pad = jnp.zeros((b_p, hid_p), jnp.float32)
    h0_pad = h0_pad.at[:B, :hidden_size].set(h0.astype(jnp.float32))

    # ---- Prologue (time-parallel): XW[t] = x_t @ Wx + b as one big GEMM -----
    rm = tc * b_p
    x2 = x_pad.reshape(t_pad * b_p, in_p)
    xw = pl.pallas_call(
        _xproj_kernel,
        out_shape=jax.ShapeDtypeStruct((t_pad * b_p, nout), jnp.float32),
        grid=(t_pad // tc,),
        in_specs=[
            pl.BlockSpec((rm, in_p), lambda r: (r, 0)),            # streamed x
            pl.BlockSpec((in_p, nout), lambda r: (0, 0),
                         pipeline_mode=pl.Buffered(1)),            # Wx resident
            pl.BlockSpec((1, nout), lambda r: (0, 0),
                         pipeline_mode=pl.Buffered(1)),            # bias resident
        ],
        out_specs=pl.BlockSpec((rm, nout), lambda r: (r, 0)),
        compiler_params=pltpu.CompilerParams(
            dimension_semantics=("parallel",),
            vmem_limit_bytes=vmem_limit),
    )(x2, prep["wx"], prep["b"])
    xw = xw.reshape(t_pad, b_p, nout)

    # ---- Serial recurrence: grid over chunks of TC timesteps ----------------
    # TODO(synk): for B >= 16 on v7x, add a leading "parallel" batch grid axis
    #             so both TensorCores run independent half-batch recurrences.
    # TODO(synk): tile nout when hid_p + out_p grows beyond ~2048 (vreg live
    #             ranges / v7x 64 MiB VMEM budget).
    y = pl.pallas_call(
        partial(_rnn_seq_kernel, hid_p=hid_p, tc=tc),
        out_shape=jax.ShapeDtypeStruct((t_pad, b_p, nout), jnp.float32),
        grid=(t_pad // tc,),
        in_specs=[
            pl.BlockSpec((tc, b_p, nout), lambda c: (c, 0, 0)),    # streamed XW
            pl.BlockSpec((b_p, hid_p), lambda c: (0, 0),
                         pipeline_mode=pl.Buffered(1)),            # h0 resident
            pl.BlockSpec((hid_p, nout), lambda c: (0, 0),
                         pipeline_mode=pl.Buffered(1)),            # Wh resident
        ],
        out_specs=pl.BlockSpec((tc, b_p, nout), lambda c: (c, 0, 0)),
        scratch_shapes=[pltpu.VMEM((b_p, hid_p), jnp.float32)],    # carried hidden
        compiler_params=pltpu.CompilerParams(
            dimension_semantics=("arbitrary",),                    # T is sequential
            vmem_limit_bytes=vmem_limit),
    )(xw, h0_pad, prep["wh"])

    outputs = y[:T, :B, hid_p:hid_p + output_size]
    hiddens = y[:T, :B, :hidden_size]
    return outputs, hiddens


def rnn_cell(x, h, prep):
    """Single-step forward, exactly the module's forward: returns (output, hidden')."""
    out, hid = rnn_forward_seq(x[None], h, prep)
    return out[0], hid[0]


# ----------------------------------------------------------------------------
# Init + pure-JAX reference (mirrors the PyTorch module, f32 throughout)
# ----------------------------------------------------------------------------
def init_params(key, input_size, hidden_size, output_size):
    fan_in = input_size + hidden_size
    bound = 1.0 / math.sqrt(fan_in)
    k1, k2, k3, k4 = jax.random.split(key, 4)
    return {
        # PyTorch nn.Linear weight layout: (out_features, in_features)
        "w_i2h": jax.random.uniform(k1, (hidden_size, fan_in), jnp.float32, -bound, bound),
        "b_i2h": jax.random.uniform(k2, (hidden_size,), jnp.float32, -bound, bound),
        "w_i2o": jax.random.uniform(k3, (output_size, fan_in), jnp.float32, -bound, bound),
        "b_i2o": jax.random.uniform(k4, (output_size,), jnp.float32, -bound, bound),
    }


def rnn_cell_ref(x, h, params):
    combined = jnp.concatenate([x, h], axis=1)
    new_h = combined @ params["w_i2h"].T + params["b_i2h"]
    out = combined @ params["w_i2o"].T + params["b_i2o"]
    return out, new_h


def rnn_seq_ref(x_seq, h0, params):
    outs, hids = [], []
    h = h0
    for t in range(x_seq.shape[0]):
        o, h = rnn_cell_ref(x_seq[t], h, params)
        outs.append(o)
        hids.append(h)
    return jnp.stack(outs), jnp.stack(hids)


if __name__ == "__main__":
    batch = 2
    input_size = 16
    hidden_size = 32
    output_size = 8
    seq_len = 8

    key = jax.random.PRNGKey(0)
    kp, kx = jax.random.split(key)
    params = init_params(kp, input_size, hidden_size, output_size)
    prep = prepare_params(params, input_size, hidden_size, output_size)

    x_seq = jax.random.normal(kx, (seq_len, batch, input_size), jnp.float32)
    h0 = jnp.zeros((batch, hidden_size), jnp.float32)   # initHidden(batch)

    # bf16 weights on the MXU (f32 accumulation / f32 hidden carry) vs. the
    # pure-f32 reference -> use a correspondingly loosened tolerance.
    tol = dict(atol=1e-2, rtol=1e-2)

    # --- single step (exactly the module's forward) ---
    out1, h1 = rnn_cell(x_seq[0], h0, prep)
    out1 = jax.block_until_ready(out1)
    h1 = jax.block_until_ready(h1)
    out1_ref, h1_ref = rnn_cell_ref(x_seq[0], h0, params)
    assert out1.shape == (batch, output_size)
    assert h1.shape == (batch, hidden_size)
    assert jnp.allclose(out1, out1_ref, **tol)
    assert jnp.allclose(h1, h1_ref, **tol)

    # --- full sequence: time loop inside one sequential pallas_call ---
    outs, hids = rnn_forward_seq(x_seq, h0, prep)
    outs = jax.block_until_ready(outs)
    hids = jax.block_until_ready(hids)
    outs_ref, hids_ref = rnn_seq_ref(x_seq, h0, params)
    assert outs.shape == (seq_len, batch, output_size)
    assert hids.shape == (seq_len, batch, hidden_size)
    assert jnp.allclose(outs, outs_ref, **tol)
    assert jnp.allclose(hids, hids_ref, **tol)

    print("KERNEL_OK")
</pallas_src>

<mosaic_0001>
module attributes {stable_mosaic.version = 11 : i64} {
  func.func @_xproj_kernel(%arg0: i32, %arg1: memref<8x128xbf16, #tpu.memory_space<vmem>>, %arg2: memref<128x256xbf16, #tpu.memory_space<vmem>>, %arg3: memref<1x256xf32, #tpu.memory_space<vmem>>, %arg4: memref<8x256xf32, #tpu.memory_space<vmem>>) attributes {dimension_semantics = [#tpu.dimension_semantics<parallel>], iteration_bounds = array<i64: 1>, scalar_prefetch = 0 : i64, scratch_operands = 0 : i64, tpu.core_type = #tpu.core_type<tc>, window_params = [{transform_indices = @transform_0, window_bounds = array<i64: 8, 128>}, {pipeline_mode = #tpu.pipeline_mode<synchronous>, transform_indices = @transform_1, window_bounds = array<i64: 128, 256>}, {pipeline_mode = #tpu.pipeline_mode<synchronous>, transform_indices = @transform_2, window_bounds = array<i64: 1, 256>}, {transform_indices = @transform_3, window_bounds = array<i64: 8, 256>}]} {
    %c0 = arith.constant 0 : index
    %c0_0 = arith.constant 0 : index
    %0 = vector.load %arg1[%c0, %c0_0] : memref<8x128xbf16, #tpu.memory_space<vmem>>, vector<8x128xbf16>
    %c0_1 = arith.constant 0 : index
    %c0_2 = arith.constant 0 : index
    %1 = vector.load %arg2[%c0_1, %c0_2] : memref<128x256xbf16, #tpu.memory_space<vmem>>, vector<128x256xbf16>
    %cst = arith.constant dense<0.000000e+00> : vector<8x256xf32>
    %2 = tpu.matmul %0, %1, %cst {dimension_numbers = #tpu.dot_dimension_numbers<[1], [0], [0], [1], [0, 0, 1, 1], [], []>} : vector<8x128xbf16>, vector<128x256xbf16>, vector<8x256xf32> -> vector<8x256xf32>
    %c0_3 = arith.constant 0 : index
    %c0_4 = arith.constant 0 : index
    %3 = vector.load %arg3[%c0_3, %c0_4] : memref<1x256xf32, #tpu.memory_space<vmem>>, vector<1x256xf32>
    %4 = vector.broadcast %3 : vector<1x256xf32> to vector<8x256xf32>
    %5 = arith.addf %2, %4 : vector<8x256xf32>
    %c0_5 = arith.constant 0 : index
    %c0_6 = arith.constant 0 : index
    %6 = vector.load %arg4[%c0_5, %c0_6] : memref<8x256xf32, #tpu.memory_space<vmem>>, vector<8x256xf32>
    tpu.vector_store %arg4[%c0_5, %c0_6], %5 {strides = array<i32>} : memref<8x256xf32, #tpu.memory_space<vmem>>, vector<8x256xf32>,
    return
  }
  func.func @transform_0(%arg0: i32) -> (i32, i32) {
    %c0_i32 = arith.constant 0 : i32
    %c0_i32_0 = arith.constant 0 : i32
    return %arg0, %c0_i32 : i32, i32
  }
  func.func @transform_1(%arg0: i32) -> (i32, i32) {
    %c0_i32 = arith.constant 0 : i32
    %c0_i32_0 = arith.constant 0 : i32
    %c0_i32_1 = arith.constant 0 : i32
    return %c0_i32, %c0_i32_0 : i32, i32
  }
  func.func @transform_2(%arg0: i32) -> (i32, i32) {
    %c0_i32 = arith.constant 0 : i32
    %c0_i32_0 = arith.constant 0 : i32
    %c0_i32_1 = arith.constant 0 : i32
    return %c0_i32, %c0_i32_0 : i32, i32
  }
  func.func @transform_3(%arg0: i32) -> (i32, i32) {
    %c0_i32 = arith.constant 0 : i32
    %c0_i32_0 = arith.constant 0 : i32
    return %arg0, %c0_i32 : i32, i32
  }
}

</mosaic_0001>

<llo_original>
// kernel: tpu_custom_call.1
$region0: #{tpu_custom_call.1}
  #allocation0 [shape = 'u32[]', space=smem, size = 0x4, offset = 0x4, fixed_abs, tag = 'smem constant byte address 0x4 - core index']
  #allocation1 [shape = 'u32[144,128]{1,0:T(1,128)}', space=vmem, size = 0x12000, scoped, tag = 'internal scratch']
  %s0 = inlined_call_operand.hbm [shape: bf16[8,128], index: 0, kind: input, shape index: {}]
  %s1 = inlined_call_operand.hbm [shape: bf16[128,256], index: 1, kind: input, shape index: {}]
  %s2 = inlined_call_operand.vmem [shape: f32[1,256], index: 2, kind: input, shape index: {}]
  %s3 = inlined_call_operand.hbm [shape: f32[8,256], index: 3, kind: output, shape index: {}]
  %s4 = sld [smem:[#allocation0]]
  $region30: #{tpu_custom_call.1} parent=0
    _
  %s6 = ssub.s32 1, %s4
  %s7 = scalar_select 0, %s6, %s4
  $region1: #{tpu_custom_call.1} parent=0
    #allocation2 [shape = 'u8[2048]{0}', space=vmem, size = 0x800, scoped, tag = 'input window, operand 0, single buffered']
    #allocation3 [shape = 's32[1]{0}', space=sflag, size = 0x4, scoped, tag = 'scoped memory for tpu_custom_call.1']
    #allocation4 [shape = 's32[1]{0}', space=sflag, size = 0x4, scoped, tag = 'scoped memory for tpu_custom_call.1']
    #allocation5 [shape = 'u8[65536]{0}', space=vmem, size = 0x10000, scoped, tag = 'input window, operand 1, single buffered']
    #allocation6 [shape = 's32[1]{0}', space=sflag, size = 0x4, scoped, tag = 'scoped memory for tpu_custom_call.1']
    #allocation7 [shape = 'u8[8192]{0}', space=vmem, size = 0x2000, scoped, tag = 'output window, operand 0, single buffered']
    %8 = vsyncpa [#allocation3], 0
    %9 = vsyncpa [#allocation6], 0
    %10 = vsyncpa [#allocation4], 0
    // Predicated region
    $region2: #{tpu_custom_call.1} parent=1 // pred_check
      _
    $region3: #{tpu_custom_call.1} parent=1 // pred_check_branch
      %12 = sbr.rel (0) target = $region5
    $region4: #{tpu_custom_call.1} parent=1 // pred_region
      %s14 = ssub.s32 64, 64
      %15 = vsyncadd [#allocation3], %s14
      %s17 = sshll.u32 [#allocation2], 4
      %s18 = int_to_ptr.vmem [resolvable:$true] %s17
      %20 = dma.hbm_to_vmem [thread:$0]  %s0, 64, %s18, [#allocation3]
    $region5: #{tpu_custom_call.1} parent=1 // pred_fallthru
      _
    // Predicated region
    $region6: #{tpu_custom_call.1} parent=1 // pred_check
      _
    $region7: #{tpu_custom_call.1} parent=1 // pred_check_branch
      %22 = sbr.rel (0) target = $region9
    $region8: #{tpu_custom_call.1} parent=1 // pred_region
      %s24 = ssub.s32 2048, 2048
      %25 = vsyncadd [#allocation6], %s24
      %s26 = sshll.u32 [#allocation5], 4
      %s27 = int_to_ptr.vmem [resolvable:$true] %s26
      %32 = dma.hbm_to_vmem [thread:$0]  %s1, 2048, %s27, [#allocation6], 128, 128, 8
    $region9: #{tpu_custom_call.1} parent=1 // pred_fallthru
      _
    // Predicated region
    $region10: #{tpu_custom_call.1} parent=1 // pred_check
      _
    $region11: #{tpu_custom_call.1} parent=1 // pred_check_branch
      %34 = sbr.rel (0) target = $region13
    $region12: #{tpu_custom_call.1} parent=1 // pred_region
      _
    $region13: #{tpu_custom_call.1} parent=1 // pred_fallthru
      _
    // Predicated region
    $region14: #{tpu_custom_call.1} parent=1 // pred_check
      _
    $region15: #{tpu_custom_call.1} parent=1 // pred_check_branch
      %36 = sbr.rel (0) target = $region17
    $region16: #{tpu_custom_call.1} parent=1 // pred_region
      %37 = dma.done [#allocation3], 64
    $region17: #{tpu_custom_call.1} parent=1 // pred_fallthru
      _
    // Predicated region
    $region18: #{tpu_custom_call.1} parent=1 // pred_check
      _
    $region19: #{tpu_custom_call.1} parent=1 // pred_check_branch
      %39 = sbr.rel (0) target = $region21
    $region20: #{tpu_custom_call.1} parent=1 // pred_region
      %40 = dma.done [#allocation6], 2048
    $region21: #{tpu_custom_call.1} parent=1 // pred_fallthru
      _
    %v42 = vld [vmem:[#allocation2] sm:$0xf]
    %v43 = vld [vmem:[#allocation5] sm:$0xff]
    %v44 = vld [vmem:[#allocation5 + $0x8] sm:$0xff]
    %v45 = vld [vmem:[#allocation5 + $0x10] sm:$0xff]
    %v46 = vld [vmem:[#allocation5 + $0x18] sm:$0xff]
    %v47 = vld [vmem:[#allocation5 + $0x20] sm:$0xff]
    %v48 = vld [vmem:[#allocation5 + $0x28] sm:$0xff]
    %v49 = vld [vmem:[#allocation5 + $0x30] sm:$0xff]
    %v50 = vld [vmem:[#allocation5 + $0x38] sm:$0xff]
    %v51 = vld [vmem:[#allocation5 + $0x40] sm:$0xff]
    %v52 = vld [vmem:[#allocation5 + $0x48] sm:$0xff]
    %v53 = vld [vmem:[#allocation5 + $0x50] sm:$0xff]
    %v54 = vld [vmem:[#allocation5 + $0x58] sm:$0xff]
    %v55 = vld [vmem:[#allocation5 + $0x60] sm:$0xff]
    %v56 = vld [vmem:[#allocation5 + $0x68] sm:$0xff]
    %v57 = vld [vmem:[#allocation5 + $0x70] sm:$0xff]
    %v58 = vld [vmem:[#allocation5 + $0x78] sm:$0xff]
    %v59 = vld [vmem:[%s2] sm:$0x3]
    %v61 = vlaneseq
    %v62 = vshrl.u32 %v61, 7
    %v63 = vsub.s32 0, %v62
    %v64 = vrot.slane %v59, %v63
    %v65 = vlaneseq
    %v66 = vshrl.u32 %v65, 7
    %v67 = vsub.s32 1, %v66
    %v68 = vrot.slane %v59, %v67
    %v87 = vunpack.c.l.b16 %v43
    %v88 = vunpack.c.h.b16 %v43
    %v89 = vunpack.c.l.b16 %v44
    %v90 = vunpack.c.h.b16 %v44
    %v91 = vunpack.c.l.b16 %v45
    %v92 = vunpack.c.h.b16 %v45
    %v93 = vunpack.c.l.b16 %v46
    %v94 = vunpack.c.h.b16 %v46
    %v95 = vunpack.c.l.b16 %v47
    %v96 = vunpack.c.h.b16 %v47
    %v97 = vunpack.c.l.b16 %v48
    %v98 = vunpack.c.h.b16 %v48
    %v99 = vunpack.c.l.b16 %v49
    %v100 = vunpack.c.h.b16 %v49
    %v101 = vunpack.c.l.b16 %v50
    %v102 = vunpack.c.h.b16 %v50
    %v103 = vunpack.c.l.b16 %v51
    %v104 = vunpack.c.h.b16 %v51
    %v105 = vunpack.c.l.b16 %v52
    %v106 = vunpack.c.h.b16 %v52
    %v107 = vunpack.c.l.b16 %v53
    %v108 = vunpack.c.h.b16 %v53
    %v109 = vunpack.c.l.b16 %v54
    %v110 = vunpack.c.h.b16 %v54
    %v111 = vunpack.c.l.b16 %v55
    %v112 = vunpack.c.h.b16 %v55
    %v113 = vunpack.c.l.b16 %v56
    %v114 = vunpack.c.h.b16 %v56
    %v115 = vunpack.c.l.b16 %v57
    %v116 = vunpack.c.h.b16 %v57
    %v117 = vunpack.c.l.b16 %v58
    %v118 = vunpack.c.h.b16 %v58
    %v119 = vpack.c.b16 %v89, %v87
    %v120 = vpack.c.b16 %v90, %v88
    %v121 = vpack.c.b16 %v93, %v91
    %v122 = vpack.c.b16 %v94, %v92
    %v123 = vpack.c.b16 %v97, %v95
    %v124 = vpack.c.b16 %v98, %v96
    %v125 = vpack.c.b16 %v101, %v99
    %v126 = vpack.c.b16 %v102, %v100
    %v127 = vpack.c.b16 %v105, %v103
    %v128 = vpack.c.b16 %v106, %v104
    %v129 = vpack.c.b16 %v109, %v107
    %v130 = vpack.c.b16 %v110, %v108
    %v131 = vpack.c.b16 %v113, %v111
    %v132 = vpack.c.b16 %v114, %v112
    %v133 = vpack.c.b16 %v117, %v115
    %v134 = vpack.c.b16 %v118, %v116
    %151 = vmatprep.subr.bf16.mxu0 %v120
    %152 = vmatpush1.bf16.msra.mxu0 %v119
    %153 = vmatprep.subr.bf16.mxu0 %v122
    %154 = vmatpush1.bf16.msra.mxu0 %v121
    %155 = vmatprep.subr.bf16.mxu0 %v124
    %156 = vmatpush1.bf16.msra.mxu0 %v123
    %157 = vmatprep.subr.bf16.mxu0 %v126
    %158 = vmatpush1.bf16.msra.mxu0 %v125
    %159 = vmatprep.subr.bf16.mxu0 %v128
    %160 = vmatpush1.bf16.msra.mxu0 %v127
    %161 = vmatprep.subr.bf16.mxu0 %v130
    %162 = vmatpush1.bf16.msra.mxu0 %v129
    %163 = vmatprep.subr.bf16.mxu0 %v132
    %164 = vmatpush1.bf16.msra.mxu0 %v131
    %165 = vmatprep.subr.bf16.mxu0 %v134
    %166 = vmatpush1.bf16.msra.mxu0 %v133
    %167 = vmatprep.subr.bf16.mxu0 0
    %168 = vmatpush1.bf16.msra.mxu0 0
    %169 = vmatprep.subr.bf16.mxu0 0
    %170 = vmatpush1.bf16.msra.mxu0 0
    %171 = vmatprep.subr.bf16.mxu0 0
    %172 = vmatpush1.bf16.msra.mxu0 0
    %173 = vmatprep.subr.bf16.mxu0 0
    %174 = vmatpush1.bf16.msra.mxu0 0
    %175 = vmatprep.subr.bf16.mxu0 0
    %176 = vmatpush1.bf16.msra.mxu0 0
    %177 = vmatprep.subr.bf16.mxu0 0
    %178 = vmatpush1.bf16.msra.mxu0 0
    %179 = vmatprep.subr.bf16.mxu0 0
    %180 = vmatpush1.bf16.msra.mxu0 0
    %181 = vmatprep.subr.bf16.mxu0 0
    %182 = vmatpush1.bf16.msra.mxu0 0
    %183 = vmatprep.mubr.bf16.mxu0 0
    %184 = vmatmul.mubr.bf16.gmra.mrb[0].mxu0 %v42
    %v185 = vpop.f32.mrb[0].mxu0
    %v186 = vadd.f32 %v64, %v185
    %v187 = vpop.f32.mrb[0].mxu0
    %v188 = vadd.f32 %v68, %v187
    %v189 = vpop.f32.mrb[0].mxu0
    %v190 = vpop.f32.mrb[0].mxu0
    %191 = vdwg.mxu0
    %192 = vst [vmem:[#allocation7] sm:$0xff] %v186
    %193 = vst [vmem:[#allocation7 + $0x8] sm:$0xff] %v188
    // Predicated region
    $region22: #{tpu_custom_call.1} parent=1 // pred_check
      _
    $region23: #{tpu_custom_call.1} parent=1 // pred_check_branch
      %195 = sbr.rel (0) target = $region25
    $region24: #{tpu_custom_call.1} parent=1 // pred_region
      %s197 = ssub.s32 256, 256
      %198 = vsyncadd [#allocation4], %s197
      %s200 = sshll.u32 [#allocation7], 4
      %s201 = int_to_ptr.vmem [resolvable:$true] %s200
      %203 = dma.vmem_to_hbm [thread:$0]  %s201, 256, %s3, [#allocation4]
    $region25: #{tpu_custom_call.1} parent=1 // pred_fallthru
      _
    // Predicated region
    $region26: #{tpu_custom_call.1} parent=1 // pred_check
      _
    $region27: #{tpu_custom_call.1} parent=1 // pred_check_branch
      %205 = sbr.rel (0) target = $region29
    $region28: #{tpu_custom_call.1} parent=1 // pred_region
      %206 = dma.done [#allocation4], 256
    $region29: #{tpu_custom_call.1} parent=1 // pred_fallthru
      _
    %207 = vsyncpa [#allocation3], 1
    %208 = vsyncpa [#allocation6], 1
    %209 = vsyncpa [#allocation4], 1

</llo_original>
